<compile_context>
chip_gen: v6e
topology: v6e:2x2x1
jax: 0.10.0
libtpu: 0.0.40
codegen_flags: <defaults>
</compile_context>

<pallas_src>
import jax
import jax.numpy as jnp
from jax.experimental import pallas as pl
from jax.experimental.pallas import tpu as pltpu

# replication_pad3d padding: (w_left, w_right, h_top, h_bottom, d_front, d_back)
PADS = (3, 5, 7, 0, 1, 2)


def _replication_pad3d_kernel(x_ref, o_ref):
    """x_ref: (Cb, D, H, W) slab; o_ref: (Cb, D_out, H_out, W_out) padded slab.

    Builds the whole padded block in registers (broadcast edges + concatenate
    along W, then H, then D) and writes it with a single full-block store.
    """
    wl, wr, ht, hb, df, db = PADS
    cb, d, h, w = x_ref.shape
    w_out = w + wl + wr
    h_out = h + ht + hb

    x = x_ref[...]                                           # (Cb, D, H, W)

    # --- W (lane axis) edge replication ---------------------------------
    parts_w = []
    if wl:
        parts_w.append(jnp.broadcast_to(x[..., :1], (cb, d, h, wl)))
    parts_w.append(x)
    if wr:
        parts_w.append(jnp.broadcast_to(x[..., w - 1:], (cb, d, h, wr)))
    xw = jnp.concatenate(parts_w, axis=-1) if len(parts_w) > 1 else parts_w[0]
    # xw: (Cb, D, H, W_out)

    # --- H (sublane axis) edge replication ------------------------------
    parts_h = []
    if ht:
        parts_h.append(jnp.broadcast_to(xw[:, :, :1, :], (cb, d, ht, w_out)))
    parts_h.append(xw)
    if hb:
        parts_h.append(jnp.broadcast_to(xw[:, :, h - 1:, :], (cb, d, hb, w_out)))
    xhw = jnp.concatenate(parts_h, axis=2) if len(parts_h) > 1 else parts_h[0]
    # xhw: (Cb, D, H_out, W_out)

    # --- D (leading axis) edge replication ------------------------------
    parts_d = []
    if df:
        parts_d.append(jnp.broadcast_to(xhw[:, :1], (cb, df, h_out, w_out)))
    parts_d.append(xhw)
    if db:
        parts_d.append(jnp.broadcast_to(xhw[:, d - 1:], (cb, db, h_out, w_out)))
    y = jnp.concatenate(parts_d, axis=1) if len(parts_d) > 1 else parts_d[0]
    # y: (Cb, D_out, H_out, W_out)

    # Single aligned full-block store (no masked partial stores).
    o_ref[...] = y


def _pick_nc_block(nc, slab_out_bytes, target_bytes=4 << 20):
    """How many (n, c) slabs to process per grid step.

    Targets ~4 MiB of output per step (big-tile HBM-BW regime) while keeping
    the grid at >= 2 steps whenever NC >= 2 so both v7x TensorCores get work.
    The last block may be ragged (grid uses pl.cdiv); Pallas clips the partial
    writeback, so no divisor search is needed.
    """
    cb = max(1, min(nc, target_bytes // max(slab_out_bytes, 1)))
    if nc >= 2:
        cb = min(cb, max(1, nc // 2))
    return cb


def replication_pad3d(x):
    """x: (N, C, D, H, W) -> (N, C, D+df+db, H+ht+hb, W+wl+wr), edge replicated."""
    wl, wr, ht, hb, df, db = PADS
    N, C, D, H, W = x.shape
    D_out, H_out, W_out = D + df + db, H + ht + hb, W + wl + wr
    NC = N * C
    itemsize = jnp.dtype(x.dtype).itemsize

    slab_out_bytes = D_out * H_out * W_out * itemsize
    Cb = _pick_nc_block(NC, slab_out_bytes)
    # TODO(synk): for extremely large D_out*H_out*W_out a single slab could
    # exceed the VMEM budget even at Cb=1; would need a plane-level grid axis.

    # Collapse (N, C) -> NC outside the kernel (cheap layout plumbing).
    x2 = x.reshape(NC, D, H, W)

    grid = (pl.cdiv(NC, Cb),)

    y2 = pl.pallas_call(
        _replication_pad3d_kernel,
        out_shape=jax.ShapeDtypeStruct((NC, D_out, H_out, W_out), x.dtype),
        grid_spec=pltpu.PrefetchScalarGridSpec(
            num_scalar_prefetch=0,
            grid=grid,
            # Full H/W (and H_out/W_out) as the last two block dims satisfies the
            # (8,128) rule (block == full array extent on those dims).
            in_specs=[pl.BlockSpec((Cb, D, H, W), lambda g: (g, 0, 0, 0))],
            out_specs=pl.BlockSpec((Cb, D_out, H_out, W_out), lambda g: (g, 0, 0, 0)),
        ),
        compiler_params=pltpu.CompilerParams(
            # Every grid step is independent; only matters on v7x (2 TCs),
            # measured no-op on v5e/v6e but harmless.
            dimension_semantics=("parallel",),
            # Double-buffered in+out at the ~4 MiB output target stays well
            # under 32 MiB on all of v5e/v6e/v7x.
            vmem_limit_bytes=32 * 1024 * 1024,
        ),
    )(x2)

    return y2.reshape(N, C, D_out, H_out, W_out)


if __name__ == "__main__":
    key = jax.random.PRNGKey(0)
    # Small 5-D input consistent with the module's (-1,-1,-1,-1,-1) float32 annotation.
    N, C, D, H, W = 2, 3, 4, 5, 6
    x = jax.random.normal(key, (N, C, D, H, W), dtype=jnp.float32)

    y = replication_pad3d(x)
    y = jax.block_until_ready(y)

    # Reference: edge-mode pad in plain JAX (matches aten.replication_pad3d).
    wl, wr, ht, hb, df, db = PADS
    y_ref = jnp.pad(x, ((0, 0), (0, 0), (df, db), (ht, hb), (wl, wr)), mode="edge")

    assert y.shape == (N, C, D + df + db, H + ht + hb, W + wl + wr), y.shape
    assert jnp.allclose(y, y_ref), "mismatch vs reference edge pad"
    print("KERNEL_OK")
</pallas_src>

<mosaic_0001>
module attributes {stable_mosaic.version = 11 : i64} {
  func.func @_replication_pad3d_kernel(%arg0: i32, %arg1: memref<3x4x5x6xf32, #tpu.memory_space<vmem>>, %arg2: memref<3x7x12x14xf32, #tpu.memory_space<vmem>>) attributes {dimension_semantics = [#tpu.dimension_semantics<parallel>], iteration_bounds = array<i64: 2>, scalar_prefetch = 0 : i64, scratch_operands = 0 : i64, tpu.core_type = #tpu.core_type<tc>, window_params = [{transform_indices = @transform_0, window_bounds = array<i64: 3, 4, 5, 6>}, {transform_indices = @transform_1, window_bounds = array<i64: 3, 7, 12, 14>}]} {
    %c0 = arith.constant 0 : index
    %c0_0 = arith.constant 0 : index
    %c0_1 = arith.constant 0 : index
    %c0_2 = arith.constant 0 : index
    %0 = vector.load %arg1[%c0, %c0_0, %c0_1, %c0_2] : memref<3x4x5x6xf32, #tpu.memory_space<vmem>>, vector<3x4x5x6xf32>
    %1 = vector.extract_strided_slice %0 {offsets = [0, 0, 0, 0], sizes = [3, 4, 5, 1], strides = [1, 1, 1, 1]} : vector<3x4x5x6xf32> to vector<3x4x5x1xf32>
    %2 = vector.shape_cast %1 : vector<3x4x5x1xf32> to vector<3x4x5x1xf32>
    %3 = vector.broadcast %2 : vector<3x4x5x1xf32> to vector<3x4x5x3xf32>
    %4 = vector.extract_strided_slice %0 {offsets = [0, 0, 0, 5], sizes = [3, 4, 5, 1], strides = [1, 1, 1, 1]} : vector<3x4x5x6xf32> to vector<3x4x5x1xf32>
    %5 = vector.shape_cast %4 : vector<3x4x5x1xf32> to vector<3x4x5x1xf32>
    %6 = vector.broadcast %5 : vector<3x4x5x1xf32> to vector<3x4x5x5xf32>
    %7 = tpu.concatenate %3, %0, %6 in 3 : vector<3x4x5x3xf32>, vector<3x4x5x6xf32>, vector<3x4x5x5xf32> -> vector<3x4x5x14xf32>
    %8 = vector.extract_strided_slice %7 {offsets = [0, 0, 0, 0], sizes = [3, 4, 1, 14], strides = [1, 1, 1, 1]} : vector<3x4x5x14xf32> to vector<3x4x1x14xf32>
    %9 = vector.shape_cast %8 : vector<3x4x1x14xf32> to vector<3x4x1x14xf32>
    %10 = vector.broadcast %9 : vector<3x4x1x14xf32> to vector<3x4x7x14xf32>
    %11 = tpu.concatenate %10, %7 in 2 : vector<3x4x7x14xf32>, vector<3x4x5x14xf32> -> vector<3x4x12x14xf32>
    %12 = vector.extract_strided_slice %11 {offsets = [0, 0, 0, 0], sizes = [3, 1, 12, 14], strides = [1, 1, 1, 1]} : vector<3x4x12x14xf32> to vector<3x1x12x14xf32>
    %13 = vector.extract_strided_slice %11 {offsets = [0, 3, 0, 0], sizes = [3, 1, 12, 14], strides = [1, 1, 1, 1]} : vector<3x4x12x14xf32> to vector<3x1x12x14xf32>
    %14 = vector.shape_cast %13 : vector<3x1x12x14xf32> to vector<3x1x12x14xf32>
    %15 = vector.broadcast %14 : vector<3x1x12x14xf32> to vector<3x2x12x14xf32>
    %16 = tpu.concatenate %12, %11, %15 in 1 : vector<3x1x12x14xf32>, vector<3x4x12x14xf32>, vector<3x2x12x14xf32> -> vector<3x7x12x14xf32>
    %c0_3 = arith.constant 0 : index
    %c0_4 = arith.constant 0 : index
    %c0_5 = arith.constant 0 : index
    %c0_6 = arith.constant 0 : index
    %17 = vector.load %arg2[%c0_3, %c0_4, %c0_5, %c0_6] : memref<3x7x12x14xf32, #tpu.memory_space<vmem>>, vector<3x7x12x14xf32>
    tpu.vector_store %arg2[%c0_3, %c0_4, %c0_5, %c0_6], %16 {strides = array<i32>} : memref<3x7x12x14xf32, #tpu.memory_space<vmem>>, vector<3x7x12x14xf32>,
    return
  }
  func.func @transform_0(%arg0: i32) -> (i32, i32, i32, i32) {
    %c0_i32 = arith.constant 0 : i32
    %c0_i32_0 = arith.constant 0 : i32
    %c0_i32_1 = arith.constant 0 : i32
    %c0_i32_2 = arith.constant 0 : i32
    return %arg0, %c0_i32, %c0_i32_0, %c0_i32_1 : i32, i32, i32, i32
  }
  func.func @transform_1(%arg0: i32) -> (i32, i32, i32, i32) {
    %c0_i32 = arith.constant 0 : i32
    %c0_i32_0 = arith.constant 0 : i32
    %c0_i32_1 = arith.constant 0 : i32
    %c0_i32_2 = arith.constant 0 : i32
    return %arg0, %c0_i32, %c0_i32_0, %c0_i32_1 : i32, i32, i32, i32
  }
}

</mosaic_0001>

<llo_original>
// kernel: tpu_custom_call.1
$region0: #{tpu_custom_call.1}
  #allocation0 [shape = 'u32[]', space=smem, size = 0x4, offset = 0x4, fixed_abs, tag = 'smem constant byte address 0x4 - core index']
  #allocation1 [shape = 'u32[144,128]{1,0:T(1,128)}', space=vmem, size = 0x12000, scoped, tag = 'internal scratch']
  %s0 = inlined_call_operand.vmem [shape: f32[6,4,5,6], index: 0, kind: input, shape index: {}]
  %s1 = inlined_call_operand.vmem [shape: f32[6,7,12,14], index: 1, kind: output, shape index: {}]
  %s2 = sld [smem:[#allocation0]]
  $region37: #{tpu_custom_call.1} parent=0
    _
  %s4 = ssub.s32 1, %s2
  %s5 = scalar_select 0, %s4, %s2
  loop: start=0, step=1, limit=4
  $region2: #{tpu_custom_call.1} parent=0 // loop_pre_header
    _
  $region3: #{tpu_custom_call.1} parent=0 // loop_header
    %s7 = sphi 0, %s11
    %p8 = scmp.ge.s32.totalorder %s7, 4
    %s17 = sphi 0, %s19
    %s20 = sphi 0, %s17
    %s21 = sphi 0, %s20
    %s37 = sphi 0, %s21
    %s43 = sphi 0, %s45
    %s46 = sphi 0, %s43
    %s47 = sphi 0, %s46
    %s63 = sphi 0, %s47
  $region4: #{tpu_custom_call.1} parent=0 // loop_header_branch
    %10 = sbr.rel (%p8) target = $region8
  $region5: #{tpu_custom_call.1} parent=0 // loop_body
    %s12 = ssub.s32 %s7, 1
    %s13 = ssub.s32 %s7, 2
    %s14 = sadd.s32 %s7, 1
    %s15 = ssub.s32 %s7, %s14
    %p16 = scmp.eq.s32.totalorder %s15, 0
    %s18 = sadd.s32 %s17, 1
    %s19 = scalar_select %p16, %s17, %s18
    %p22 = pneg %p16
    %p23 = scmp.eq.s32.totalorder %s7, 1
    %p24 = por %p22, %p23
    %p25 = scmp.ne.s32.totalorder %s17, %s20
    %p26 = scmp.eq.s32.totalorder %s7, 0
    %p27 = por %p25, %p26
    %p28 = scmp.ne.s32.totalorder %s17, %s20
    %p29 = scmp.eq.s32.totalorder %s12, 1
    %p30 = por %p28, %p29
    %p31 = scmp.ne.s32.totalorder %s20, %s21
    %p32 = scmp.eq.s32.totalorder %s12, 0
    %p33 = por %p31, %p32
    %p34 = scmp.ne.s32.totalorder %s20, %s21
    %p35 = scmp.eq.s32.totalorder %s13, 1
    %p36 = por %p34, %p35
    %p38 = scmp.ne.s32.totalorder %s21, %s37
    %p39 = scmp.eq.s32.totalorder %s13, 0
    %p40 = por %p38, %p39
    %s41 = ssub.s32 %s7, %s14
    %p42 = scmp.eq.s32.totalorder %s41, 0
    %s44 = sadd.s32 %s43, 1
    %s45 = scalar_select %p42, %s43, %s44
    %p48 = pneg %p42
    %p49 = scmp.eq.s32.totalorder %s7, 1
    %p50 = por %p48, %p49
    %p51 = scmp.ne.s32.totalorder %s43, %s46
    %p52 = scmp.eq.s32.totalorder %s7, 0
    %p53 = por %p51, %p52
    %p54 = scmp.ne.s32.totalorder %s43, %s46
    %p55 = scmp.eq.s32.totalorder %s12, 1
    %p56 = por %p54, %p55
    %p57 = scmp.ne.s32.totalorder %s46, %s47
    %p58 = scmp.eq.s32.totalorder %s12, 0
    %p59 = por %p57, %p58
    %p60 = scmp.ne.s32.totalorder %s46, %s47
    %p61 = scmp.eq.s32.totalorder %s13, 1
    %p62 = por %p60, %p61
    %p64 = scmp.ne.s32.totalorder %s47, %s63
    %p65 = scmp.eq.s32.totalorder %s13, 0
    %p66 = por %p64, %p65
    %p67 = scmp.le.s32.totalorder 1, %s7
    %p68 = scmp.lt.s32.totalorder %s7, 3
    %p69 = pnand %p67, %p68
    %p70 = pneg %p69
    // Predicated region
    $region9: #{tpu_custom_call.1} parent=5 // pred_check
      _
    $region10: #{tpu_custom_call.1} parent=5 // pred_check_branch
      %72 = sbr.rel (%p69) target = $region12
    $region11: #{tpu_custom_call.1} parent=5 // pred_region
      %s73 = ssub.s32 %s7, 1
    $region12: #{tpu_custom_call.1} parent=5 // pred_fallthru
      _
    %p74 = scmp.lt.s32.totalorder %s7, 2
    // Predicated region
    $region13: #{tpu_custom_call.1} parent=5 // pred_check
      %p75 = pneg %p74
    $region14: #{tpu_custom_call.1} parent=5 // pred_check_branch
      %77 = sbr.rel (%p75) target = $region16
    $region15: #{tpu_custom_call.1} parent=5 // pred_region
      // Predicated region
      $region17: #{tpu_custom_call.1} parent=15 // pred_check
        %p78 = pneg %p27
      $region18: #{tpu_custom_call.1} parent=15 // pred_check_branch
        %80 = sbr.rel (%p78) target = $region20
      $region19: #{tpu_custom_call.1} parent=15 // pred_region
        %s81 = smul.u32 3, %s7
        %p82 = scmp.lt.s32.totalorder %s81, 5
        %s83 = scalar_select %p82, %s81, 5
        %s84 = smul.addr %s83, 4
        %s85 = smul.addr %s84, 8
        %s86 = scalar_lea.vmem %s0, %s85
        %s87 = smul.u32 3, %s7
      $region20: #{tpu_custom_call.1} parent=15 // pred_fallthru
        _
    $region16: #{tpu_custom_call.1} parent=5 // pred_fallthru
      _
    %p88 = scmp.le.s32.totalorder 1, %s7
    %p89 = scmp.lt.s32.totalorder %s7, 3
    %p90 = pnand %p88, %p89
    %p91 = pneg %p90
    // Predicated region
    $region21: #{tpu_custom_call.1} parent=5 // pred_check
      _
    $region22: #{tpu_custom_call.1} parent=5 // pred_check_branch
      %93 = sbr.rel (%p90) target = $region24
    $region23: #{tpu_custom_call.1} parent=5 // pred_region
      %s94 = ssub.s32 %s7, 1
      %s95 = smul.u32 3, %s12
      %p96 = scmp.lt.s32.totalorder %s95, 5
      %s97 = scalar_select %p96, %s95, 5
      %s98 = smul.addr %s97, 4
      %s99 = smul.addr %s98, 8
      %s100 = scalar_lea.vmem %s0, %s99
      %p101 = pneg %p33
      %p102 = pneg %p30
      %p103 = pneg %p59
      %p104 = pneg %p56
      %s105 = smul.u32 3, %s12
      %p106 = scmp.lt.s32.totalorder %s105, 5
      %s107 = scalar_select %p106, %s105, 5
      %s108 = smul.addr %s107, 14
      %s109 = smul.addr %s108, 8
      %s110 = scalar_lea.vmem %s1, %s109
      %s111 = smul.u32 3, %s12
      %p112 = scmp.lt.s32.totalorder %s111, 5
      %s113 = scalar_select %p112, %s111, 5
      %s114 = smul.addr %s113, 4
      %s115 = smul.addr %s114, 8
      %s116 = scalar_lea.vmem %s0, %s115
      %s117 = smul.u32 3, %s12
      %s118 = smul.u32 3, %s12
      %p119 = scmp.lt.s32.totalorder %s118, 5
      %s120 = scalar_select %p119, %s118, 5
      %s121 = smul.addr %s120, 14
      %s122 = smul.addr %s121, 8
      %s123 = scalar_lea.vmem %s1, %s122
      %s124 = smul.u32 3, %s12
      %v125 = vld [vmem:[%s116] sm:$0x1f]
      %v126 = vld [vmem:[%s116 + $0x8] sm:$0x1f]
      %v127 = vld [vmem:[%s116 + $0x10] sm:$0x1f]
      %v128 = vld [vmem:[%s116 + $0x18] sm:$0x1f]
      %v129 = vld [vmem:[%s116 + $0x20] sm:$0x1f]
      %v130 = vld [vmem:[%s116 + $0x28] sm:$0x1f]
      %v131 = vld [vmem:[%s116 + $0x30] sm:$0x1f]
      %v132 = vld [vmem:[%s116 + $0x38] sm:$0x1f]
      %v133 = vld [vmem:[%s116 + $0x40] sm:$0x1f]
      %v134 = vld [vmem:[%s116 + $0x48] sm:$0x1f]
      %v135 = vld [vmem:[%s116 + $0x50] sm:$0x1f]
      %v136 = vld [vmem:[%s116 + $0x58] sm:$0x1f]
      %138 = vset.pattern.permute.xlu0 0
      %139 = vperm.xlu0 %138, %v125
      %v140 = vpop.permute.xlu0 %139
      %143 = vset.pattern.permute.xlu0 0
      %144 = vperm.xlu0 %143, %v126
      %v145 = vpop.permute.xlu0 %144
      %148 = vset.pattern.permute.xlu0 0
      %149 = vperm.xlu0 %148, %v127
      %v150 = vpop.permute.xlu0 %149
      %153 = vset.pattern.permute.xlu0 0
      %154 = vperm.xlu0 %153, %v128
      %v155 = vpop.permute.xlu0 %154
      %158 = vset.pattern.permute.xlu0 0
      %159 = vperm.xlu0 %158, %v129
      %v160 = vpop.permute.xlu0 %159
      %163 = vset.pattern.permute.xlu0 0
      %164 = vperm.xlu0 %163, %v130
      %v165 = vpop.permute.xlu0 %164
      %168 = vset.pattern.permute.xlu0 0
      %169 = vperm.xlu0 %168, %v131
      %v170 = vpop.permute.xlu0 %169
      %173 = vset.pattern.permute.xlu0 0
      %174 = vperm.xlu0 %173, %v132
      %v175 = vpop.permute.xlu0 %174
      %178 = vset.pattern.permute.xlu0 0
      %179 = vperm.xlu0 %178, %v133
      %v180 = vpop.permute.xlu0 %179
      %183 = vset.pattern.permute.xlu0 0
      %184 = vperm.xlu0 %183, %v134
      %v185 = vpop.permute.xlu0 %184
      %188 = vset.pattern.permute.xlu0 0
      %189 = vperm.xlu0 %188, %v135
      %v190 = vpop.permute.xlu0 %189
      %193 = vset.pattern.permute.xlu0 0
      %194 = vperm.xlu0 %193, %v136
      %v195 = vpop.permute.xlu0 %194
      %197 = vset.pattern.permute.xlu0 5
      %198 = vperm.xlu0 %197, %v125
      %v199 = vpop.permute.xlu0 %198
      %201 = vset.pattern.permute.xlu0 5
      %202 = vperm.xlu0 %201, %v126
      %v203 = vpop.permute.xlu0 %202
      %205 = vset.pattern.permute.xlu0 5
      %206 = vperm.xlu0 %205, %v127
      %v207 = vpop.permute.xlu0 %206
      %209 = vset.pattern.permute.xlu0 5
      %210 = vperm.xlu0 %209, %v128
      %v211 = vpop.permute.xlu0 %210
      %213 = vset.pattern.permute.xlu0 5
      %214 = vperm.xlu0 %213, %v129
      %v215 = vpop.permute.xlu0 %214
      %217 = vset.pattern.permute.xlu0 5
      %218 = vperm.xlu0 %217, %v130
      %v219 = vpop.permute.xlu0 %218
      %221 = vset.pattern.permute.xlu0 5
      %222 = vperm.xlu0 %221, %v131
      %v223 = vpop.permute.xlu0 %222
      %225 = vset.pattern.permute.xlu0 5
      %226 = vperm.xlu0 %225, %v132
      %v227 = vpop.permute.xlu0 %226
      %229 = vset.pattern.permute.xlu0 5
      %230 = vperm.xlu0 %229, %v133
      %v231 = vpop.permute.xlu0 %230
      %233 = vset.pattern.permute.xlu0 5
      %234 = vperm.xlu0 %233, %v134
      %v235 = vpop.permute.xlu0 %234
      %237 = vset.pattern.permute.xlu0 5
      %238 = vperm.xlu0 %237, %v135
      %v239 = vpop.permute.xlu0 %238
      %241 = vset.pattern.permute.xlu0 5
      %242 = vperm.xlu0 %241, %v136
      %v243 = vpop.permute.xlu0 %242
      %245 = vrot.lane.b32.xlu0 %v125, 3
      %v246 = vpop.permute.xlu0 %245
      %247 = vrot.lane.b32.xlu0 %v126, 3
      %v248 = vpop.permute.xlu0 %247
      %249 = vrot.lane.b32.xlu0 %v127, 3
      %v250 = vpop.permute.xlu0 %249
      %251 = vrot.lane.b32.xlu0 %v128, 3
      %v252 = vpop.permute.xlu0 %251
      %253 = vrot.lane.b32.xlu0 %v129, 3
      %v254 = vpop.permute.xlu0 %253
      %255 = vrot.lane.b32.xlu0 %v130, 3
      %v256 = vpop.permute.xlu0 %255
      %257 = vrot.lane.b32.xlu0 %v131, 3
      %v258 = vpop.permute.xlu0 %257
      %259 = vrot.lane.b32.xlu0 %v132, 3
      %v260 = vpop.permute.xlu0 %259
      %261 = vrot.lane.b32.xlu0 %v133, 3
      %v262 = vpop.permute.xlu0 %261
      %263 = vrot.lane.b32.xlu0 %v134, 3
      %v264 = vpop.permute.xlu0 %263
      %265 = vrot.lane.b32.xlu0 %v135, 3
      %v266 = vpop.permute.xlu0 %265
      %267 = vrot.lane.b32.xlu0 %v136, 3
      %v268 = vpop.permute.xlu0 %267
      %vm281 = vcmask 23552
      %v282 = vsel %vm281, %v140, %v246
      %v283 = vsel %vm281, %v145, %v248
      %v284 = vsel %vm281, %v150, %v250
      %v285 = vsel %vm281, %v155, %v252
      %v286 = vsel %vm281, %v160, %v254
      %v287 = vsel %vm281, %v165, %v256
      %v288 = vsel %vm281, %v170, %v258
      %v289 = vsel %vm281, %v175, %v260
      %v290 = vsel %vm281, %v180, %v262
      %v291 = vsel %vm281, %v185, %v264
      %v292 = vsel %vm281, %v190, %v266
      %v293 = vsel %vm281, %v195, %v268
      %vm294 = vcmask 72704
      %v295 = vsel %vm294, %v282, %v199
      %v296 = vsel %vm294, %v283, %v203
      %v297 = vsel %vm294, %v284, %v207
      %v298 = vsel %vm294, %v285, %v211
      %v299 = vsel %vm294, %v286, %v215
      %v300 = vsel %vm294, %v287, %v219
      %v301 = vsel %vm294, %v288, %v223
      %v302 = vsel %vm294, %v289, %v227
      %v303 = vsel %vm294, %v290, %v231
      %v304 = vsel %vm294, %v291, %v235
      %v305 = vsel %vm294, %v292, %v239
      %v306 = vsel %vm294, %v293, %v243
      %v307 = vlaneseq
      %v308 = vshrl.u32 %v307, 7
      %v309 = vsub.s32 0, %v308
      %v310 = vrot.slane %v295, %v309
      %v311 = vlaneseq
      %v312 = vshrl.u32 %v311, 7
      %v313 = vsub.s32 0, %v312
      %v314 = vrot.slane %v296, %v313
      %v315 = vlaneseq
      %v316 = vshrl.u32 %v315, 7
      %v317 = vsub.s32 0, %v316
      %v318 = vrot.slane %v297, %v317
      %v319 = vlaneseq
      %v320 = vshrl.u32 %v319, 7
      %v321 = vsub.s32 0, %v320
      %v322 = vrot.slane %v298, %v321
      %v323 = vlaneseq
      %v324 = vshrl.u32 %v323, 7
      %v325 = vsub.s32 0, %v324
      %v326 = vrot.slane %v299, %v325
      %v327 = vlaneseq
      %v328 = vshrl.u32 %v327, 7
      %v329 = vsub.s32 0, %v328
      %v330 = vrot.slane %v300, %v329
      %v331 = vlaneseq
      %v332 = vshrl.u32 %v331, 7
      %v333 = vsub.s32 0, %v332
      %v334 = vrot.slane %v301, %v333
      %v335 = vlaneseq
      %v336 = vshrl.u32 %v335, 7
      %v337 = vsub.s32 0, %v336
      %v338 = vrot.slane %v302, %v337
      %v339 = vlaneseq
      %v340 = vshrl.u32 %v339, 7
      %v341 = vsub.s32 0, %v340
      %v342 = vrot.slane %v303, %v341
      %v343 = vlaneseq
      %v344 = vshrl.u32 %v343, 7
      %v345 = vsub.s32 0, %v344
      %v346 = vrot.slane %v304, %v345
      %v347 = vlaneseq
      %v348 = vshrl.u32 %v347, 7
      %v349 = vsub.s32 0, %v348
      %v350 = vrot.slane %v305, %v349
      %v351 = vlaneseq
      %v352 = vshrl.u32 %v351, 7
      %v353 = vsub.s32 0, %v352
      %v354 = vrot.slane %v306, %v353
      %v367 = vrot.slane %v295, 1
      %v368 = vrot.slane %v296, 1
      %v369 = vrot.slane %v297, 1
      %v370 = vrot.slane %v298, 1
      %v371 = vrot.slane %v299, 1
      %v372 = vrot.slane %v300, 1
      %v373 = vrot.slane %v301, 1
      %v374 = vrot.slane %v302, 1
      %v375 = vrot.slane %v303, 1
      %v376 = vrot.slane %v304, 1
      %v377 = vrot.slane %v305, 1
      %v378 = vrot.slane %v306, 1
      %vm391 = vcmask 1046528
      %v392 = vsel %vm391, %v310, %v367
      %v393 = vsel %vm391, %v314, %v368
      %v394 = vsel %vm391, %v318, %v369
      %v395 = vsel %vm391, %v322, %v370
      %v396 = vsel %vm391, %v326, %v371
      %v397 = vsel %vm391, %v330, %v372
      %v398 = vsel %vm391, %v334, %v373
      %v399 = vsel %vm391, %v338, %v374
      %v400 = vsel %vm391, %v342, %v375
      %v401 = vsel %vm391, %v346, %v376
      %v402 = vsel %vm391, %v350, %v377
      %v403 = vsel %vm391, %v354, %v378
      %vm404 = vcmask 113664
      %405 = vst.msk [vmem:[%s123] sm:$0xff] %vm404, %v392
      %vm406 = vcmask 109568
      %407 = vst.msk [vmem:[%s123 + $0x8] sm:$0xf] %vm406, %v367
      %408 = vst.msk [vmem:[%s123 + $0x10] sm:$0xff] %vm404, %v392
      %409 = vst.msk [vmem:[%s123 + $0x18] sm:$0xf] %vm406, %v367
      %410 = vst.msk [vmem:[%s123 + $0x20] sm:$0xff] %vm404, %v393
      %411 = vst.msk [vmem:[%s123 + $0x28] sm:$0xf] %vm406, %v368
      %412 = vst.msk [vmem:[%s123 + $0x30] sm:$0xff] %vm404, %v394
      %413 = vst.msk [vmem:[%s123 + $0x38] sm:$0xf] %vm406, %v369
      %414 = vst.msk [vmem:[%s123 + $0x40] sm:$0xff] %vm404, %v395
      %415 = vst.msk [vmem:[%s123 + $0x48] sm:$0xf] %vm406, %v370
      %416 = vst.msk [vmem:[%s123 + $0x50] sm:$0xff] %vm404, %v395
      %417 = vst.msk [vmem:[%s123 + $0x58] sm:$0xf] %vm406, %v370
      %418 = vst.msk [vmem:[%s123 + $0x60] sm:$0xff] %vm404, %v395
      %419 = vst.msk [vmem:[%s123 + $0x68] sm:$0xf] %vm406, %v370
      %420 = vst.msk [vmem:[%s123 + $0x70] sm:$0xff] %vm404, %v396
      %421 = vst.msk [vmem:[%s123 + $0x78] sm:$0xf] %vm406, %v371
      %422 = vst.msk [vmem:[%s123 + $0x80] sm:$0xff] %vm404, %v396
      %423 = vst.msk [vmem:[%s123 + $0x88] sm:$0xf] %vm406, %v371
      %424 = vst.msk [vmem:[%s123 + $0x90] sm:$0xff] %vm404, %v397
      %425 = vst.msk [vmem:[%s123 + $0x98] sm:$0xf] %vm406, %v372
      %426 = vst.msk [vmem:[%s123 + $0xa0] sm:$0xff] %vm404, %v398
      %427 = vst.msk [vmem:[%s123 + $0xa8] sm:$0xf] %vm406, %v373
      %428 = vst.msk [vmem:[%s123 + $0xb0] sm:$0xff] %vm404, %v399
      %429 = vst.msk [vmem:[%s123 + $0xb8] sm:$0xf] %vm406, %v374
      %430 = vst.msk [vmem:[%s123 + $0xc0] sm:$0xff] %vm404, %v399
      %431 = vst.msk [vmem:[%s123 + $0xc8] sm:$0xf] %vm406, %v374
      %432 = vst.msk [vmem:[%s123 + $0xd0] sm:$0xff] %vm404, %v399
      %433 = vst.msk [vmem:[%s123 + $0xd8] sm:$0xf] %vm406, %v374
      %434 = vst.msk [vmem:[%s123 + $0xe0] sm:$0xff] %vm404, %v400
      %435 = vst.msk [vmem:[%s123 + $0xe8] sm:$0xf] %vm406, %v375
      %436 = vst.msk [vmem:[%s123 + $0xf0] sm:$0xff] %vm404, %v400
      %437 = vst.msk [vmem:[%s123 + $0xf8] sm:$0xf] %vm406, %v375
      %438 = vst.msk [vmem:[%s123 + $0x100] sm:$0xff] %vm404, %v401
      %439 = vst.msk [vmem:[%s123 + $0x108] sm:$0xf] %vm406, %v376
      %440 = vst.msk [vmem:[%s123 + $0x110] sm:$0xff] %vm404, %v402
      %441 = vst.msk [vmem:[%s123 + $0x118] sm:$0xf] %vm406, %v377
      %442 = vst.msk [vmem:[%s123 + $0x120] sm:$0xff] %vm404, %v403
      %443 = vst.msk [vmem:[%s123 + $0x128] sm:$0xf] %vm406, %v378
      %444 = vst.msk [vmem:[%s123 + $0x130] sm:$0xff] %vm404, %v403
      %445 = vst.msk [vmem:[%s123 + $0x138] sm:$0xf] %vm406, %v378
      %446 = vst.msk [vmem:[%s123 + $0x140] sm:$0xff] %vm404, %v403
      %447 = vst.msk [vmem:[%s123 + $0x148] sm:$0xf] %vm406, %v378
      %s448 = smul.u32 3, %s12
      %p449 = scmp.lt.s32.totalorder %s448, 5
      %s450 = scalar_select %p449, %s448, 5
      %s451 = smul.addr %s450, 14
      %s452 = smul.addr %s451, 8
      %s453 = scalar_lea.vmem %s1, %s452
      // Predicated region
      $region25: #{tpu_custom_call.1} parent=23 // pred_check
        %p454 = pneg %p56
      $region26: #{tpu_custom_call.1} parent=23 // pred_check_branch
        %456 = sbr.rel (%p454) target = $region28
      $region27: #{tpu_custom_call.1} parent=23 // pred_region
        %s457 = smul.u32 3, %s12
      $region28: #{tpu_custom_call.1} parent=23 // pred_fallthru
        _
    $region24: #{tpu_custom_call.1} parent=5 // pred_fallthru
      _
    %p458 = scmp.le.s32.totalorder 2, %s7
    // Predicated region
    $region29: #{tpu_custom_call.1} parent=5 // pred_check
      %p459 = pneg %p458
    $region30: #{tpu_custom_call.1} parent=5 // pred_check_branch
      %461 = sbr.rel (%p459) target = $region32
    $region31: #{tpu_custom_call.1} parent=5 // pred_region
      %s462 = ssub.s32 %s7, 2
      // Predicated region
      $region33: #{tpu_custom_call.1} parent=31 // pred_check
        %p463 = pneg %p62
      $region34: #{tpu_custom_call.1} parent=31 // pred_check_branch
        %465 = sbr.rel (%p463) target = $region36
      $region35: #{tpu_custom_call.1} parent=31 // pred_region
        %s466 = smul.u32 3, %s13
        %p467 = scmp.lt.s32.totalorder %s466, 5
        %s468 = scalar_select %p467, %s466, 5
        %s469 = smul.addr %s468, 14
        %s470 = smul.addr %s469, 8
        %s471 = scalar_lea.vmem %s1, %s470
      $region36: #{tpu_custom_call.1} parent=31 // pred_fallthru
        _
    $region32: #{tpu_custom_call.1} parent=5 // pred_fallthru
      _
  $region6: #{tpu_custom_call.1} parent=0 // loop_footer
    %s11 = sadd.s32 1, %s7
  $region7: #{tpu_custom_call.1} parent=0 // loop_footer_branch
    %6 = sbr.rel target = $region3
  $region8: #{tpu_custom_call.1} parent=0 // loop_exit
    _

</llo_original>
